<compile_context>
chip_gen: v6e
topology: v6e:2x2x1
jax: 0.10.0
libtpu: 0.0.40
codegen_flags: <defaults>
</compile_context>

<pallas_src>
import functools

import numpy as np
import jax
import jax.numpy as jnp
from jax.experimental import pallas as pl
from jax.experimental.pallas import tpu as pltpu

INPUT_SIZE = 5
HIDDEN_SIZE = 5
OUTPUT_SIZE = 5
BATCHSIZE_PARA = 4
BATCH_SIZE = 8                                   # batchsize_data // batchsize_para
BATCHSIZE_DATA = BATCHSIZE_PARA * BATCH_SIZE     # 32
SPATIAL = INPUT_SIZE * OUTPUT_SIZE               # 25
ROWS = 8                                         # parameter-group rows padded 4 -> 8
GATE_W = 8 * SPATIAL                             # 200: [i_d i_l | f_d f_l | o_d o_l | g_d g_l]
PACK_W = 128                                     # lane-dense packed state / update width
SEG = 32                                         # 32-lane-aligned segment stride


# ---------------------------------------------------------------------------
# Kernel (single invocation, no grid; whole arrays resident in VMEM/SMEM)
# ---------------------------------------------------------------------------
def _kernel(scal_ref, x_ref, c2t_ref, w1b_ref, grad_ref, st_ref,
            m_ref, lx1_ref, l25_ref, b_ref, uo_ref,
            st_out_ref, upd_ref):
    conv1_w = scal_ref[0]
    conv1_b = scal_ref[1]
    conv2_b = scal_ref[2]

    def dotb(a, b):
        # bf16 MXU pass, f32 accumulation; all elementwise math stays f32.
        return jnp.dot(a.astype(jnp.bfloat16), b, preferred_element_type=jnp.float32)

    # conv1 (1x1 conv) + relu  == elementwise scale & bias + relu
    y = jnp.maximum(x_ref[...] * conv1_w + conv1_b, 0.0)              # (32, 25) f32
    # conv2 (3x3, pad=1) as a flat 25x25 matmul + relu
    z = jnp.maximum(dotb(y, c2t_ref[...]) + conv2_b, 0.0)             # (32, 25) f32
    # weight1 mixing: one block matmul produces all parameter-group rows at once
    t = dotb(w1b_ref[...], z)                                         # (R, 25)
    # grad + mixed features; pro1/pro2 bilinear maps and the dir/lr LSTM input
    # maps are pre-folded host-side into the single 25x50 matrix M.
    xw = dotb(grad_ref[...] + t, m_ref[...])                          # (R, 50) [dir|lr]

    st = st_ref[...]                                                  # (R, 128)
    h1 = st[:, 0:SPATIAL]
    c1 = st[:, SEG:SEG + SPATIAL]
    h2 = st[:, 2 * SEG:2 * SEG + SPATIAL]
    c2 = st[:, 3 * SEG:3 * SEG + SPATIAL]

    def lstm_layer(x_terms, c, b_idx):
        # gate columns: [i_d i_l | f_d f_l | o_d o_l | g_d g_l], 25 lanes each;
        # c is the cell state shared by the dir and lr branches.
        gates = b_ref[b_idx]                                          # (1, 200)
        for xa, la in x_terms:
            gates = gates + dotb(xa, la)                              # (R, 200)
        sig = jax.nn.sigmoid(gates[:, 0:150])     # i|f|o in one EUP sweep
        g_t = jnp.tanh(gates[:, 150:200])         # g in one EUP sweep
        c_d = sig[:, 50:75] * c + sig[:, 0:25] * g_t[:, 0:25]
        c_l = sig[:, 75:100] * c + sig[:, 25:50] * g_t[:, 25:50]
        h_d = sig[:, 100:125] * jnp.tanh(c_d)
        h_l = sig[:, 125:150] * jnp.tanh(c_l)
        return h_d, h_l, c_d, c_l

    h1d, h1l, c1d, c1l = lstm_layer(
        [(xw, lx1_ref[...]), (h1, l25_ref[0])], c1, 0)
    h2d, h2l, c2d, c2l = lstm_layer(
        [(h1d, l25_ref[1]), (h1l, l25_ref[2]), (h2, l25_ref[3])], c2, 1)

    # output maps (dir / lr)
    upd_dir = dotb(h2d, uo_ref[0])                                    # (R, 25)
    upd_lr = jax.nn.sigmoid(dotb(h2l, uo_ref[1]))                     # (R, 25)

    def norm_prod(a_d, a_l):
        # next_state = dir_state * lr_state, L2-normalized over the 25 elems
        prod = a_d * a_l
        ss = jnp.sum(prod * prod, axis=1, keepdims=True)              # (R, 1)
        # rsqrt(max(ss, eps^2)) == 1 / max(sqrt(ss), eps)  (F.normalize eps=1e-12)
        return prod * jax.lax.rsqrt(jnp.maximum(ss, 1e-24))

    # Packed, 32-lane-aligned output slabs -> single unmasked 128-lane stores.
    pad7 = jnp.zeros((ROWS, SEG - SPATIAL), jnp.float32)
    st_out_ref[...] = jnp.concatenate(
        [norm_prod(h1d, h1l), pad7, norm_prod(c1d, c1l), pad7,
         norm_prod(h2d, h2l), pad7, norm_prod(c2d, c2l), pad7], axis=1)

    pad39 = jnp.zeros((ROWS, 2 * SEG - SPATIAL), jnp.float32)
    upd_ref[...] = jnp.concatenate([upd_lr, pad39, upd_dir, pad39], axis=1)


# ---------------------------------------------------------------------------
# pallas_call (built once at import time)
# ---------------------------------------------------------------------------
_PALLAS_FWD = pl.pallas_call(
    _kernel,
    out_shape=(jax.ShapeDtypeStruct((ROWS, PACK_W), jnp.float32),   # packed next_state
               jax.ShapeDtypeStruct((ROWS, PACK_W), jnp.float32)),  # packed [lr | dir]
    in_specs=[
        pl.BlockSpec(memory_space=pltpu.MemorySpace.SMEM),   # conv scalars (4,)
        pl.BlockSpec(memory_space=pltpu.MemorySpace.VMEM),   # inputs_data (32, 25)
        pl.BlockSpec(memory_space=pltpu.MemorySpace.VMEM),   # conv2 matrix^T (25, 25) bf16
        pl.BlockSpec(memory_space=pltpu.MemorySpace.VMEM),   # weight1 block (8, 32) bf16
        pl.BlockSpec(memory_space=pltpu.MemorySpace.VMEM),   # input_gradients padded (8, 25)
        pl.BlockSpec(memory_space=pltpu.MemorySpace.VMEM),   # packed prev_state (8, 128)
        pl.BlockSpec(memory_space=pltpu.MemorySpace.VMEM),   # fused pro+input map M (25, 50) bf16
        pl.BlockSpec(memory_space=pltpu.MemorySpace.VMEM),   # layer-1 x gate block (50, 200) bf16
        pl.BlockSpec(memory_space=pltpu.MemorySpace.VMEM),   # 25-row gate blocks (4, 25, 200) bf16
        pl.BlockSpec(memory_space=pltpu.MemorySpace.VMEM),   # gate biases (2, 1, 200) f32
        pl.BlockSpec(memory_space=pltpu.MemorySpace.VMEM),   # output maps (2, 25, 25) bf16
    ],
    out_specs=(pl.BlockSpec(memory_space=pltpu.MemorySpace.VMEM),
               pl.BlockSpec(memory_space=pltpu.MemorySpace.VMEM)),
    input_output_aliases={5: 0},   # prev_state HBM buffer re-used for next_state
    cost_estimate=pl.CostEstimate(flops=600_000, transcendentals=5_000,
                                  bytes_accessed=90_000),
)


# ---------------------------------------------------------------------------
# Wrapper (state stays packed across optimizer steps; buffer donated)
# ---------------------------------------------------------------------------
@functools.partial(jax.jit, donate_argnums=(2,))
def _forward_packed(params, input_gradients, state_packed, inputs_data):
    grad = jnp.zeros((ROWS, SPATIAL), jnp.float32).at[:BATCHSIZE_PARA].set(
        input_gradients.reshape(BATCHSIZE_PARA, SPATIAL))
    state_out, upd = _PALLAS_FWD(
        params["scalars"], inputs_data.reshape(BATCHSIZE_DATA, SPATIAL),
        params["conv2_mat_T"], params["w1_block"], grad, state_packed,
        params["m_in"], params["lx1"], params["l25"], params["gate_bias"],
        params["uo"])
    update_lr = upd[:BATCHSIZE_PARA, 0:SPATIAL].reshape(
        BATCHSIZE_PARA, INPUT_SIZE, OUTPUT_SIZE)
    update_dir = upd[:BATCHSIZE_PARA, 2 * SEG:2 * SEG + SPATIAL].reshape(
        BATCHSIZE_PARA, INPUT_SIZE, OUTPUT_SIZE)
    return update_lr, update_dir, state_out


def pack_state(state_tuple):
    s = jnp.zeros((ROWS, PACK_W), jnp.float32)
    for k, st in enumerate(state_tuple):
        s = s.at[:BATCHSIZE_PARA, k * SEG:k * SEG + SPATIAL].set(
            jnp.asarray(st, jnp.float32).reshape(BATCHSIZE_PARA, SPATIAL))
    return s


def unpack_state(state_packed):
    return tuple(
        state_packed[:BATCHSIZE_PARA, k * SEG:k * SEG + SPATIAL].reshape(
            BATCHSIZE_PARA, INPUT_SIZE, OUTPUT_SIZE)
        for k in range(4))


def lstm_optimizee_forward(params, input_gradients, prev_state, inputs_data):
    """Returns (update_lr, update_dir, next_state_packed).

    `prev_state` may be None, the packed (ROWS, 128) array returned by a
    previous call (preferred: it stays in the packed layout and the HBM buffer
    is aliased/donated), or the original 4-tuple of (batchsize_para, 5, 5)
    state tensors (use unpack_state() to recover that form).
    """
    if prev_state is None:
        prev_state = jnp.zeros((ROWS, PACK_W), jnp.float32)
    elif isinstance(prev_state, (tuple, list)):
        prev_state = pack_state(prev_state)
    return _forward_packed(params, input_gradients, prev_state, inputs_data)


# ---------------------------------------------------------------------------
# Host-side pre-lowering (glue)
# ---------------------------------------------------------------------------
def _conv2_as_matrix(w33):
    """3x3, stride-1, pad-1 conv on a 5x5 grid as a (25, 25) matrix."""
    K = np.zeros((25, 25), np.float32)
    w = np.asarray(w33, np.float32)
    for r in range(5):
        for c in range(5):
            for dr in range(3):
                for dc in range(3):
                    rr, cc = r + dr - 1, c + dc - 1
                    if 0 <= rr < 5 and 0 <= cc < 5:
                        K[r * 5 + c, rr * 5 + cc] = w[dr, dc]
    return K


def _kron_row(W):
    # row-vec lowering of X -> W @ X @ W :  vec_r(WXW) = vec_r(X) @ kron(W.T, W)
    W = np.asarray(W, np.float32)
    return np.kron(W.T, W)


def _kron_row_ab(A, B):
    # row-vec lowering of X -> A @ X @ B :  vec_r(AXB) = vec_r(X) @ kron(A.T, B)
    return np.kron(np.asarray(A, np.float32).T, np.asarray(B, np.float32))


def _layer_blocks(Pd, Pl, base):
    """One fused dir+lr matrix-LSTM layer, split into x-block / h-block / bias."""
    S = SPATIAL
    Lx = np.zeros((2 * S, GATE_W), np.float32)   # rows 0:25 -> x_dir, 25:50 -> x_lr
    Lh = np.zeros((S, GATE_W), np.float32)       # rows -> shared hidden state
    b = np.zeros((1, GATE_W), np.float32)
    for q in range(4):                                   # gates i, f, o, g
        cd = slice(2 * S * q, 2 * S * q + S)             # dir cols of gate q
        cl = slice(2 * S * q + S, 2 * S * q + 2 * S)     # lr  cols of gate q
        Lx[0:S, cd] = _kron_row(Pd[base + 3 * q + 0])
        Lx[S:2 * S, cl] = _kron_row(Pl[base + 3 * q + 0])
        Lh[:, cd] = _kron_row(Pd[base + 3 * q + 1])
        Lh[:, cl] = _kron_row(Pl[base + 3 * q + 1])
        b[0, cd] = Pd[base + 3 * q + 2].reshape(-1)
        b[0, cl] = Pl[base + 3 * q + 2].reshape(-1)
    return Lx, Lh, b


def init_params(key):
    ks = jax.random.split(key, 9)
    conv1_w = jax.random.normal(ks[0], (), jnp.float32) * 0.5
    conv1_b = jax.random.normal(ks[1], (), jnp.float32) * 0.1
    conv2_w = jax.random.normal(ks[2], (3, 3), jnp.float32) * 0.3
    conv2_b = jax.random.normal(ks[3], (), jnp.float32) * 0.1
    weight1 = jax.random.normal(ks[4], (1, BATCH_SIZE), jnp.float32)
    pro1 = jax.random.normal(ks[5], (INPUT_SIZE, INPUT_SIZE), jnp.float32) * 0.3
    pro2 = jax.random.normal(ks[6], (INPUT_SIZE, INPUT_SIZE), jnp.float32) * 0.3
    dir_lstm = jax.random.normal(ks[7], (27, HIDDEN_SIZE, HIDDEN_SIZE), jnp.float32) * 0.3
    lr_lstm = jax.random.normal(ks[8], (27, HIDDEN_SIZE, HIDDEN_SIZE), jnp.float32) * 0.3

    S = SPATIAL
    Pd = np.asarray(dir_lstm, np.float32)
    Pl = np.asarray(lr_lstm, np.float32)

    # conv2 as a 25x25 matrix (transposed for the row-vector matmul in-kernel)
    K = _conv2_as_matrix(conv2_w)

    # weight1 mixing for all parameter groups as one (ROWS, 32) block matrix
    # (rows BATCHSIZE_PARA..ROWS-1 are zero padding).
    w1 = np.asarray(weight1, np.float32)
    w1b = np.zeros((ROWS, BATCHSIZE_DATA), np.float32)
    for p in range(BATCHSIZE_PARA):
        w1b[p, p * BATCH_SIZE:(p + 1) * BATCH_SIZE] = w1[0]

    # pro1^T(.)pro1 then pro2^T(.)pro2 (row-vec kron, reference ordering), then
    # folded into the dir/lr LSTM input maps -> one 25x50 matrix M.
    p1 = np.asarray(pro1, np.float32)
    p2 = np.asarray(pro2, np.float32)
    pro_mat = np.kron(p1, p1) @ np.kron(p2, p2)
    k0 = np.zeros((S, 2 * S), np.float32)
    k0[:, :S] = _kron_row(Pd[0])
    k0[:, S:] = _kron_row(Pl[0])
    m_in = pro_mat @ k0                                              # (25, 50)

    # LSTM gate blocks split into x-blocks and h-blocks (no in-kernel concat)
    Lx1, Lh1, b1 = _layer_blocks(Pd, Pl, 1)
    Lx2, Lh2, b2 = _layer_blocks(Pd, Pl, 13)
    l25 = np.stack([Lh1, Lx2[:S], Lx2[S:], Lh2])                     # (4, 25, 200)

    # output maps (dir / lr)
    uo = np.stack([_kron_row_ab(Pd[25], Pd[26]), _kron_row_ab(Pl[25], Pl[26])])

    scalars = np.array([np.float32(conv1_w), np.float32(conv1_b),
                        np.float32(conv2_b), 0.0], np.float32)

    bf16 = jnp.bfloat16
    return dict(
        scalars=jnp.asarray(scalars),                 # f32, SMEM
        conv2_mat_T=jnp.asarray(K.T, bf16),
        w1_block=jnp.asarray(w1b, bf16),
        m_in=jnp.asarray(m_in, bf16),
        lx1=jnp.asarray(Lx1, bf16),
        l25=jnp.asarray(l25, bf16),
        gate_bias=jnp.asarray(np.stack([b1, b2]), jnp.float32),      # (2, 1, 200)
        uo=jnp.asarray(uo, bf16),
    )


if __name__ == "__main__":
    key = jax.random.PRNGKey(0)
    kp, kg, kd = jax.random.split(key, 3)
    params = init_params(kp)

    input_gradients = jax.random.normal(
        kg, (BATCHSIZE_PARA, INPUT_SIZE, INPUT_SIZE), jnp.float32)
    inputs_data = jax.random.normal(
        kd, (BATCHSIZE_DATA, SPATIAL), jnp.float32)   # flattened (B, 1, 5, 5)

    # Step 1: prev_state = None; step 2: feed the packed state straight back
    # (the state buffer is aliased/donated; no repacking between steps).
    update_lr, update_dir, state = lstm_optimizee_forward(
        params, input_gradients, None, inputs_data)
    update_lr, update_dir, state = lstm_optimizee_forward(
        params, input_gradients, state, inputs_data)

    next_state = unpack_state(state)
    jax.block_until_ready(update_lr)
    jax.block_until_ready(update_dir)
    for s in next_state:
        jax.block_until_ready(s)

    assert update_lr.shape == (BATCHSIZE_PARA, INPUT_SIZE, OUTPUT_SIZE)
    assert update_dir.shape == (BATCHSIZE_PARA, INPUT_SIZE, OUTPUT_SIZE)
    assert all(s.shape == (BATCHSIZE_PARA, INPUT_SIZE, OUTPUT_SIZE) for s in next_state)
    assert all(bool(jnp.all(jnp.isfinite(x))) for x in
               (update_lr, update_dir) + tuple(next_state))
    print("KERNEL_OK")
</pallas_src>

<mosaic_0001>
module attributes {stable_mosaic.version = 11 : i64} {
  func.func @_kernel(%arg0: memref<4xf32, #tpu.memory_space<smem>>, %arg1: memref<32x25xf32, #tpu.memory_space<vmem>>, %arg2: memref<25x25xbf16, #tpu.memory_space<vmem>>, %arg3: memref<8x32xbf16, #tpu.memory_space<vmem>>, %arg4: memref<8x25xf32, #tpu.memory_space<vmem>>, %arg5: memref<8x128xf32, #tpu.memory_space<vmem>>, %arg6: memref<25x50xbf16, #tpu.memory_space<vmem>>, %arg7: memref<50x200xbf16, #tpu.memory_space<vmem>>, %arg8: memref<4x25x200xbf16, #tpu.memory_space<vmem>>, %arg9: memref<2x1x200xf32, #tpu.memory_space<vmem>>, %arg10: memref<2x25x25xbf16, #tpu.memory_space<vmem>>, %arg11: memref<8x128xf32, #tpu.memory_space<vmem>>, %arg12: memref<8x128xf32, #tpu.memory_space<vmem>>) attributes {dimension_semantics = [], scalar_prefetch = 0 : i64, scratch_operands = 0 : i64, tpu.core_type = #tpu.core_type<tc>} {
    %c0 = arith.constant 0 : index
    %0 = memref.load %arg0[%c0] : memref<4xf32, #tpu.memory_space<smem>>
    %c1 = arith.constant 1 : index
    %1 = memref.load %arg0[%c1] : memref<4xf32, #tpu.memory_space<smem>>
    %c2 = arith.constant 2 : index
    %2 = memref.load %arg0[%c2] : memref<4xf32, #tpu.memory_space<smem>>
    %c0_0 = arith.constant 0 : index
    %c0_1 = arith.constant 0 : index
    %3 = vector.load %arg1[%c0_0, %c0_1] : memref<32x25xf32, #tpu.memory_space<vmem>>, vector<32x25xf32>
    %4 = vector.broadcast %0 : f32 to vector<32x25xf32>
    %5 = arith.mulf %3, %4 : vector<32x25xf32>
    %6 = vector.broadcast %1 : f32 to vector<32x25xf32>
    %7 = arith.addf %5, %6 : vector<32x25xf32>
    %cst = arith.constant 0.000000e+00 : f32
    %8 = vector.broadcast %cst : f32 to vector<32x25xf32>
    %9 = arith.maximumf %7, %8 : vector<32x25xf32>
    %c0_2 = arith.constant 0 : index
    %c0_3 = arith.constant 0 : index
    %10 = vector.load %arg2[%c0_2, %c0_3] : memref<25x25xbf16, #tpu.memory_space<vmem>>, vector<25x25xbf16>
    %11 = arith.truncf %9 : vector<32x25xf32> to vector<32x25xbf16>
    %cst_4 = arith.constant dense<0.000000e+00> : vector<32x25xf32>
    %12 = tpu.matmul %11, %10, %cst_4 {dimension_numbers = #tpu.dot_dimension_numbers<[1], [0], [0], [1], [0, 0, 1, 1], [], []>} : vector<32x25xbf16>, vector<25x25xbf16>, vector<32x25xf32> -> vector<32x25xf32>
    %13 = vector.broadcast %2 : f32 to vector<32x25xf32>
    %14 = arith.addf %12, %13 : vector<32x25xf32>
    %cst_5 = arith.constant 0.000000e+00 : f32
    %15 = vector.broadcast %cst_5 : f32 to vector<32x25xf32>
    %16 = arith.maximumf %14, %15 : vector<32x25xf32>
    %c0_6 = arith.constant 0 : index
    %c0_7 = arith.constant 0 : index
    %17 = vector.load %arg3[%c0_6, %c0_7] : memref<8x32xbf16, #tpu.memory_space<vmem>>, vector<8x32xbf16>
    %cst_8 = arith.constant dense<0.000000e+00> : vector<8x25xf32>
    %18 = tpu.matmul %17, %16, %cst_8 {dimension_numbers = #tpu.dot_dimension_numbers<[1], [0], [0], [1], [0, 0, 1, 1], [], []>} : vector<8x32xbf16>, vector<32x25xf32>, vector<8x25xf32> -> vector<8x25xf32>
    %c0_9 = arith.constant 0 : index
    %c0_10 = arith.constant 0 : index
    %19 = vector.load %arg4[%c0_9, %c0_10] : memref<8x25xf32, #tpu.memory_space<vmem>>, vector<8x25xf32>
    %20 = arith.addf %19, %18 : vector<8x25xf32>
    %c0_11 = arith.constant 0 : index
    %c0_12 = arith.constant 0 : index
    %21 = vector.load %arg6[%c0_11, %c0_12] : memref<25x50xbf16, #tpu.memory_space<vmem>>, vector<25x50xbf16>
    %22 = arith.truncf %20 : vector<8x25xf32> to vector<8x25xbf16>
    %cst_13 = arith.constant dense<0.000000e+00> : vector<8x50xf32>
    %23 = tpu.matmul %22, %21, %cst_13 {dimension_numbers = #tpu.dot_dimension_numbers<[1], [0], [0], [1], [0, 0, 1, 1], [], []>} : vector<8x25xbf16>, vector<25x50xbf16>, vector<8x50xf32> -> vector<8x50xf32>
    %c0_14 = arith.constant 0 : index
    %c0_15 = arith.constant 0 : index
    %24 = vector.load %arg5[%c0_14, %c0_15] : memref<8x128xf32, #tpu.memory_space<vmem>>, vector<8x128xf32>
    %25 = vector.extract_strided_slice %24 {offsets = [0, 0], sizes = [8, 25], strides = [1, 1]} : vector<8x128xf32> to vector<8x25xf32>
    %26 = vector.extract_strided_slice %24 {offsets = [0, 32], sizes = [8, 25], strides = [1, 1]} : vector<8x128xf32> to vector<8x25xf32>
    %27 = vector.extract_strided_slice %24 {offsets = [0, 64], sizes = [8, 25], strides = [1, 1]} : vector<8x128xf32> to vector<8x25xf32>
    %28 = vector.extract_strided_slice %24 {offsets = [0, 96], sizes = [8, 25], strides = [1, 1]} : vector<8x128xf32> to vector<8x25xf32>
    %c0_16 = arith.constant 0 : index
    %c0_17 = arith.constant 0 : index
    %29 = vector.load %arg7[%c0_16, %c0_17] : memref<50x200xbf16, #tpu.memory_space<vmem>>, vector<50x200xbf16>
    %c0_18 = arith.constant 0 : index
    %c0_19 = arith.constant 0 : index
    %c0_20 = arith.constant 0 : index
    %30 = vector.load %arg8[%c0_18, %c0_19, %c0_20] : memref<4x25x200xbf16, #tpu.memory_space<vmem>>, vector<1x25x200xbf16>
    %31 = vector.shape_cast %30 : vector<1x25x200xbf16> to vector<25x200xbf16>
    %c0_21 = arith.constant 0 : index
    %c0_22 = arith.constant 0 : index
    %c0_23 = arith.constant 0 : index
    %32 = vector.load %arg9[%c0_21, %c0_22, %c0_23] : memref<2x1x200xf32, #tpu.memory_space<vmem>>, vector<1x1x200xf32>
    %33 = vector.shape_cast %32 : vector<1x1x200xf32> to vector<1x200xf32>
    %34 = arith.truncf %23 : vector<8x50xf32> to vector<8x50xbf16>
    %cst_24 = arith.constant dense<0.000000e+00> : vector<8x200xf32>
    %35 = tpu.matmul %34, %29, %cst_24 {dimension_numbers = #tpu.dot_dimension_numbers<[1], [0], [0], [1], [0, 0, 1, 1], [], []>} : vector<8x50xbf16>, vector<50x200xbf16>, vector<8x200xf32> -> vector<8x200xf32>
    %36 = vector.broadcast %33 : vector<1x200xf32> to vector<8x200xf32>
    %37 = arith.addf %36, %35 : vector<8x200xf32>
    %38 = arith.truncf %25 : vector<8x25xf32> to vector<8x25xbf16>
    %cst_25 = arith.constant dense<0.000000e+00> : vector<8x200xf32>
    %39 = tpu.matmul %38, %31, %cst_25 {dimension_numbers = #tpu.dot_dimension_numbers<[1], [0], [0], [1], [0, 0, 1, 1], [], []>} : vector<8x25xbf16>, vector<25x200xbf16>, vector<8x200xf32> -> vector<8x200xf32>
    %40 = arith.addf %37, %39 : vector<8x200xf32>
    %41 = vector.extract_strided_slice %40 {offsets = [0, 0], sizes = [8, 150], strides = [1, 1]} : vector<8x200xf32> to vector<8x150xf32>
    %42 = arith.negf %41 : vector<8x150xf32>
    %43 = math.exp %42 : vector<8x150xf32>
    %cst_26 = arith.constant 1.000000e+00 : f32
    %44 = vector.broadcast %cst_26 : f32 to vector<8x150xf32>
    %45 = arith.addf %44, %43 : vector<8x150xf32>
    %46 = arith.divf %44, %45 : vector<8x150xf32>
    %47 = vector.extract_strided_slice %40 {offsets = [0, 150], sizes = [8, 50], strides = [1, 1]} : vector<8x200xf32> to vector<8x50xf32>
    %48 = math.tanh %47 : vector<8x50xf32>
    %49 = vector.extract_strided_slice %46 {offsets = [0, 50], sizes = [8, 25], strides = [1, 1]} : vector<8x150xf32> to vector<8x25xf32>
    %50 = arith.mulf %49, %26 : vector<8x25xf32>
    %51 = vector.extract_strided_slice %46 {offsets = [0, 0], sizes = [8, 25], strides = [1, 1]} : vector<8x150xf32> to vector<8x25xf32>
    %52 = vector.extract_strided_slice %48 {offsets = [0, 0], sizes = [8, 25], strides = [1, 1]} : vector<8x50xf32> to vector<8x25xf32>
    %53 = arith.mulf %51, %52 : vector<8x25xf32>
    %54 = arith.addf %50, %53 : vector<8x25xf32>
    %55 = vector.extract_strided_slice %46 {offsets = [0, 75], sizes = [8, 25], strides = [1, 1]} : vector<8x150xf32> to vector<8x25xf32>
    %56 = arith.mulf %55, %26 : vector<8x25xf32>
    %57 = vector.extract_strided_slice %46 {offsets = [0, 25], sizes = [8, 25], strides = [1, 1]} : vector<8x150xf32> to vector<8x25xf32>
    %58 = vector.extract_strided_slice %48 {offsets = [0, 25], sizes = [8, 25], strides = [1, 1]} : vector<8x50xf32> to vector<8x25xf32>
    %59 = arith.mulf %57, %58 : vector<8x25xf32>
    %60 = arith.addf %56, %59 : vector<8x25xf32>
    %61 = vector.extract_strided_slice %46 {offsets = [0, 100], sizes = [8, 25], strides = [1, 1]} : vector<8x150xf32> to vector<8x25xf32>
    %62 = math.tanh %54 : vector<8x25xf32>
    %63 = arith.mulf %61, %62 : vector<8x25xf32>
    %64 = vector.extract_strided_slice %46 {offsets = [0, 125], sizes = [8, 25], strides = [1, 1]} : vector<8x150xf32> to vector<8x25xf32>
    %65 = math.tanh %60 : vector<8x25xf32>
    %66 = arith.mulf %64, %65 : vector<8x25xf32>
    %c1_27 = arith.constant 1 : index
    %c0_28 = arith.constant 0 : index
    %c0_29 = arith.constant 0 : index
    %67 = vector.load %arg8[%c1_27, %c0_28, %c0_29] : memref<4x25x200xbf16, #tpu.memory_space<vmem>>, vector<1x25x200xbf16>
    %68 = vector.shape_cast %67 : vector<1x25x200xbf16> to vector<25x200xbf16>
    %c2_30 = arith.constant 2 : index
    %c0_31 = arith.constant 0 : index
    %c0_32 = arith.constant 0 : index
    %69 = vector.load %arg8[%c2_30, %c0_31, %c0_32] : memref<4x25x200xbf16, #tpu.memory_space<vmem>>, vector<1x25x200xbf16>
    %70 = vector.shape_cast %69 : vector<1x25x200xbf16> to vector<25x200xbf16>
    %c3 = arith.constant 3 : index
    %c0_33 = arith.constant 0 : index
    %c0_34 = arith.constant 0 : index
    %71 = vector.load %arg8[%c3, %c0_33, %c0_34] : memref<4x25x200xbf16, #tpu.memory_space<vmem>>, vector<1x25x200xbf16>
    %72 = vector.shape_cast %71 : vector<1x25x200xbf16> to vector<25x200xbf16>
    %c1_35 = arith.constant 1 : index
    %c0_36 = arith.constant 0 : index
    %c0_37 = arith.constant 0 : index
    %73 = vector.load %arg9[%c1_35, %c0_36, %c0_37] : memref<2x1x200xf32, #tpu.memory_space<vmem>>, vector<1x1x200xf32>
    %74 = vector.shape_cast %73 : vector<1x1x200xf32> to vector<1x200xf32>
    %75 = arith.truncf %63 : vector<8x25xf32> to vector<8x25xbf16>
    %cst_38 = arith.constant dense<0.000000e+00> : vector<8x200xf32>
    %76 = tpu.matmul %75, %68, %cst_38 {dimension_numbers = #tpu.dot_dimension_numbers<[1], [0], [0], [1], [0, 0, 1, 1], [], []>} : vector<8x25xbf16>, vector<25x200xbf16>, vector<8x200xf32> -> vector<8x200xf32>
    %77 = vector.broadcast %74 : vector<1x200xf32> to vector<8x200xf32>
    %78 = arith.addf %77, %76 : vector<8x200xf32>
    %79 = arith.truncf %66 : vector<8x25xf32> to vector<8x25xbf16>
    %cst_39 = arith.constant dense<0.000000e+00> : vector<8x200xf32>
    %80 = tpu.matmul %79, %70, %cst_39 {dimension_numbers = #tpu.dot_dimension_numbers<[1], [0], [0], [1], [0, 0, 1, 1], [], []>} : vector<8x25xbf16>, vector<25x200xbf16>, vector<8x200xf32> -> vector<8x200xf32>
    %81 = arith.addf %78, %80 : vector<8x200xf32>
    %82 = arith.truncf %27 : vector<8x25xf32> to vector<8x25xbf16>
    %cst_40 = arith.constant dense<0.000000e+00> : vector<8x200xf32>
    %83 = tpu.matmul %82, %72, %cst_40 {dimension_numbers = #tpu.dot_dimension_numbers<[1], [0], [0], [1], [0, 0, 1, 1], [], []>} : vector<8x25xbf16>, vector<25x200xbf16>, vector<8x200xf32> -> vector<8x200xf32>
    %84 = arith.addf %81, %83 : vector<8x200xf32>
    %85 = vector.extract_strided_slice %84 {offsets = [0, 0], sizes = [8, 150], strides = [1, 1]} : vector<8x200xf32> to vector<8x150xf32>
    %86 = arith.negf %85 : vector<8x150xf32>
    %87 = math.exp %86 : vector<8x150xf32>
    %cst_41 = arith.constant 1.000000e+00 : f32
    %88 = vector.broadcast %cst_41 : f32 to vector<8x150xf32>
    %89 = arith.addf %88, %87 : vector<8x150xf32>
    %90 = arith.divf %88, %89 : vector<8x150xf32>
    %91 = vector.extract_strided_slice %84 {offsets = [0, 150], sizes = [8, 50], strides = [1, 1]} : vector<8x200xf32> to vector<8x50xf32>
    %92 = math.tanh %91 : vector<8x50xf32>
    %93 = vector.extract_strided_slice %90 {offsets = [0, 50], sizes = [8, 25], strides = [1, 1]} : vector<8x150xf32> to vector<8x25xf32>
    %94 = arith.mulf %93, %28 : vector<8x25xf32>
    %95 = vector.extract_strided_slice %90 {offsets = [0, 0], sizes = [8, 25], strides = [1, 1]} : vector<8x150xf32> to vector<8x25xf32>
    %96 = vector.extract_strided_slice %92 {offsets = [0, 0], sizes = [8, 25], strides = [1, 1]} : vector<8x50xf32> to vector<8x25xf32>
    %97 = arith.mulf %95, %96 : vector<8x25xf32>
    %98 = arith.addf %94, %97 : vector<8x25xf32>
    %99 = vector.extract_strided_slice %90 {offsets = [0, 75], sizes = [8, 25], strides = [1, 1]} : vector<8x150xf32> to vector<8x25xf32>
    %100 = arith.mulf %99, %28 : vector<8x25xf32>
    %101 = vector.extract_strided_slice %90 {offsets = [0, 25], sizes = [8, 25], strides = [1, 1]} : vector<8x150xf32> to vector<8x25xf32>
    %102 = vector.extract_strided_slice %92 {offsets = [0, 25], sizes = [8, 25], strides = [1, 1]} : vector<8x50xf32> to vector<8x25xf32>
    %103 = arith.mulf %101, %102 : vector<8x25xf32>
    %104 = arith.addf %100, %103 : vector<8x25xf32>
    %105 = vector.extract_strided_slice %90 {offsets = [0, 100], sizes = [8, 25], strides = [1, 1]} : vector<8x150xf32> to vector<8x25xf32>
    %106 = math.tanh %98 : vector<8x25xf32>
    %107 = arith.mulf %105, %106 : vector<8x25xf32>
    %108 = vector.extract_strided_slice %90 {offsets = [0, 125], sizes = [8, 25], strides = [1, 1]} : vector<8x150xf32> to vector<8x25xf32>
    %109 = math.tanh %104 : vector<8x25xf32>
    %110 = arith.mulf %108, %109 : vector<8x25xf32>
    %c0_42 = arith.constant 0 : index
    %c0_43 = arith.constant 0 : index
    %c0_44 = arith.constant 0 : index
    %111 = vector.load %arg10[%c0_42, %c0_43, %c0_44] : memref<2x25x25xbf16, #tpu.memory_space<vmem>>, vector<1x25x25xbf16>
    %112 = vector.shape_cast %111 : vector<1x25x25xbf16> to vector<25x25xbf16>
    %113 = arith.truncf %107 : vector<8x25xf32> to vector<8x25xbf16>
    %cst_45 = arith.constant dense<0.000000e+00> : vector<8x25xf32>
    %114 = tpu.matmul %113, %112, %cst_45 {dimension_numbers = #tpu.dot_dimension_numbers<[1], [0], [0], [1], [0, 0, 1, 1], [], []>} : vector<8x25xbf16>, vector<25x25xbf16>, vector<8x25xf32> -> vector<8x25xf32>
    %c1_46 = arith.constant 1 : index
    %c0_47 = arith.constant 0 : index
    %c0_48 = arith.constant 0 : index
    %115 = vector.load %arg10[%c1_46, %c0_47, %c0_48] : memref<2x25x25xbf16, #tpu.memory_space<vmem>>, vector<1x25x25xbf16>
    %116 = vector.shape_cast %115 : vector<1x25x25xbf16> to vector<25x25xbf16>
    %117 = arith.truncf %110 : vector<8x25xf32> to vector<8x25xbf16>
    %cst_49 = arith.constant dense<0.000000e+00> : vector<8x25xf32>
    %118 = tpu.matmul %117, %116, %cst_49 {dimension_numbers = #tpu.dot_dimension_numbers<[1], [0], [0], [1], [0, 0, 1, 1], [], []>} : vector<8x25xbf16>, vector<25x25xbf16>, vector<8x25xf32> -> vector<8x25xf32>
    %119 = arith.negf %118 : vector<8x25xf32>
    %120 = math.exp %119 : vector<8x25xf32>
    %cst_50 = arith.constant 1.000000e+00 : f32
    %121 = vector.broadcast %cst_50 : f32 to vector<8x25xf32>
    %122 = arith.addf %121, %120 : vector<8x25xf32>
    %123 = arith.divf %121, %122 : vector<8x25xf32>
    %cst_51 = arith.constant 0.000000e+00 : f32
    %124 = vector.broadcast %cst_51 : f32 to vector<8x7xf32>
    %125 = arith.mulf %63, %66 : vector<8x25xf32>
    %126 = arith.mulf %125, %125 : vector<8x25xf32>
    %cst_52 = arith.constant dense<0.000000e+00> : vector<8xf32>
    %127 = vector.multi_reduction <add>, %126, %cst_52 [1] : vector<8x25xf32> to vector<8xf32>
    %128 = vector.shape_cast %127 : vector<8xf32> to vector<8x1xf32>
    %cst_53 = arith.constant 1.000000e-24 : f32
    %129 = vector.broadcast %cst_53 : f32 to vector<8x1xf32>
    %130 = arith.maximumf %128, %129 : vector<8x1xf32>
    %131 = math.rsqrt %130 : vector<8x1xf32>
    %132 = vector.broadcast %131 : vector<8x1xf32> to vector<8x25xf32>
    %133 = arith.mulf %125, %132 : vector<8x25xf32>
    %134 = arith.mulf %54, %60 : vector<8x25xf32>
    %135 = arith.mulf %134, %134 : vector<8x25xf32>
    %cst_54 = arith.constant dense<0.000000e+00> : vector<8xf32>
    %136 = vector.multi_reduction <add>, %135, %cst_54 [1] : vector<8x25xf32> to vector<8xf32>
    %137 = vector.shape_cast %136 : vector<8xf32> to vector<8x1xf32>
    %cst_55 = arith.constant 1.000000e-24 : f32
    %138 = vector.broadcast %cst_55 : f32 to vector<8x1xf32>
    %139 = arith.maximumf %137, %138 : vector<8x1xf32>
    %140 = math.rsqrt %139 : vector<8x1xf32>
    %141 = vector.broadcast %140 : vector<8x1xf32> to vector<8x25xf32>
    %142 = arith.mulf %134, %141 : vector<8x25xf32>
    %143 = arith.mulf %107, %110 : vector<8x25xf32>
    %144 = arith.mulf %143, %143 : vector<8x25xf32>
    %cst_56 = arith.constant dense<0.000000e+00> : vector<8xf32>
    %145 = vector.multi_reduction <add>, %144, %cst_56 [1] : vector<8x25xf32> to vector<8xf32>
    %146 = vector.shape_cast %145 : vector<8xf32> to vector<8x1xf32>
    %cst_57 = arith.constant 1.000000e-24 : f32
    %147 = vector.broadcast %cst_57 : f32 to vector<8x1xf32>
    %148 = arith.maximumf %146, %147 : vector<8x1xf32>
    %149 = math.rsqrt %148 : vector<8x1xf32>
    %150 = vector.broadcast %149 : vector<8x1xf32> to vector<8x25xf32>
    %151 = arith.mulf %143, %150 : vector<8x25xf32>
    %152 = arith.mulf %98, %104 : vector<8x25xf32>
    %153 = arith.mulf %152, %152 : vector<8x25xf32>
    %cst_58 = arith.constant dense<0.000000e+00> : vector<8xf32>
    %154 = vector.multi_reduction <add>, %153, %cst_58 [1] : vector<8x25xf32> to vector<8xf32>
    %155 = vector.shape_cast %154 : vector<8xf32> to vector<8x1xf32>
    %cst_59 = arith.constant 1.000000e-24 : f32
    %156 = vector.broadcast %cst_59 : f32 to vector<8x1xf32>
    %157 = arith.maximumf %155, %156 : vector<8x1xf32>
    %158 = math.rsqrt %157 : vector<8x1xf32>
    %159 = vector.broadcast %158 : vector<8x1xf32> to vector<8x25xf32>
    %160 = arith.mulf %152, %159 : vector<8x25xf32>
    %161 = tpu.concatenate %133, %124, %142, %124, %151, %124, %160, %124 in 1 : vector<8x25xf32>, vector<8x7xf32>, vector<8x25xf32>, vector<8x7xf32>, vector<8x25xf32>, vector<8x7xf32>, vector<8x25xf32>, vector<8x7xf32> -> vector<8x128xf32>
    %c0_60 = arith.constant 0 : index
    %c0_61 = arith.constant 0 : index
    %162 = vector.load %arg11[%c0_60, %c0_61] : memref<8x128xf32, #tpu.memory_space<vmem>>, vector<8x128xf32>
    tpu.vector_store %arg11[%c0_60, %c0_61], %161 {strides = array<i32>} : memref<8x128xf32, #tpu.memory_space<vmem>>, vector<8x128xf32>,
    %cst_62 = arith.constant 0.000000e+00 : f32
    %163 = vector.broadcast %cst_62 : f32 to vector<8x39xf32>
    %164 = tpu.concatenate %123, %163, %114, %163 in 1 : vector<8x25xf32>, vector<8x39xf32>, vector<8x25xf32>, vector<8x39xf32> -> vector<8x128xf32>
    %c0_63 = arith.constant 0 : index
    %c0_64 = arith.constant 0 : index
    %165 = vector.load %arg12[%c0_63, %c0_64] : memref<8x128xf32, #tpu.memory_space<vmem>>, vector<8x128xf32>
    tpu.vector_store %arg12[%c0_63, %c0_64], %164 {strides = array<i32>} : memref<8x128xf32, #tpu.memory_space<vmem>>, vector<8x128xf32>,
    return
  }
}

</mosaic_0001>

<llo_original>
// kernel: _forward_packed.1
$region0: #{_forward_packed.1}
  #allocation0 [shape = 'u32[]', space=smem, size = 0x4, offset = 0x4, fixed_abs, tag = 'smem constant byte address 0x4 - core index']
  #allocation1 [shape = 'u32[144,128]{1,0:T(1,128)}', space=vmem, size = 0x12000, scoped, tag = 'internal scratch']
  %s0 = inlined_call_operand.vmem [shape: f32[4], index: 0, kind: input, shape index: {}]
  %s1 = inlined_call_operand.vmem [shape: f32[32,25], index: 1, kind: input, shape index: {}]
  %s2 = inlined_call_operand.vmem [shape: bf16[25,25], index: 2, kind: input, shape index: {}]
  %s3 = inlined_call_operand.vmem [shape: bf16[8,32], index: 3, kind: input, shape index: {}]
  %s4 = inlined_call_operand.vmem [shape: f32[8,25], index: 4, kind: input, shape index: {}]
  %s5 = inlined_call_operand.vmem [shape: f32[8,128], index: 5, kind: input, shape index: {}, may-alias: {5,11}]
  %s6 = inlined_call_operand.vmem [shape: bf16[25,50], index: 6, kind: input, shape index: {}]
  %s7 = inlined_call_operand.vmem [shape: bf16[50,200], index: 7, kind: input, shape index: {}]
  %s8 = inlined_call_operand.vmem [shape: bf16[4,25,200], index: 8, kind: input, shape index: {}]
  %s9 = inlined_call_operand.vmem [shape: f32[2,1,200], index: 9, kind: input, shape index: {}]
  %s10 = inlined_call_operand.vmem [shape: bf16[2,25,25], index: 10, kind: input, shape index: {}]
  %s11 = inlined_call_operand.vmem [shape: f32[8,128], index: 11, kind: output, shape index: {0}, may-alias: {5,11}]
  %s12 = inlined_call_operand.vmem [shape: f32[8,128], index: 12, kind: output, shape index: {1}]
  %13 = xla_tuple %s11, %s12
  %s14 = sld [smem:[#allocation0]]
  $region66: #{_forward_packed.1} parent=0
    _
  %s16 = ssub.s32 1, %s14
  %s17 = scalar_select 0, %s16, %s14
  $region1: #{_forward_packed.1} parent=0
    #allocation2 [shape = 'u8[512]{0}', space=smem, size = 0x200, scoped, tag = 'input window, operand 0, single buffered']
    #allocation3 [shape = 's32[1]{0}', space=sflag, size = 0x4, scoped, tag = 'scoped memory for _forward_packed.1']
    %18 = vsyncpa [#allocation3], 0
    // Predicated region
    $region2: #{_forward_packed.1} parent=1 // pred_check
      _
    $region3: #{_forward_packed.1} parent=1 // pred_check_branch
      %20 = sbr.rel (0) target = $region5
    $region4: #{_forward_packed.1} parent=1 // pred_region
      %s22 = ssub.s32 16, 16
      %23 = vsyncadd [#allocation3], %s22
      %s25 = sshll.u32 %s0, 4
      %s26 = int_to_ptr.vmem [resolvable:$true] %s25
      %28 = dma.vmem_to_smem %s26, 16, [#allocation2], [#allocation3]
    $region5: #{_forward_packed.1} parent=1 // pred_fallthru
      _
    // Predicated region
    $region6: #{_forward_packed.1} parent=1 // pred_check
      _
    $region7: #{_forward_packed.1} parent=1 // pred_check_branch
      %30 = sbr.rel (0) target = $region9
    $region8: #{_forward_packed.1} parent=1 // pred_region
      _
    $region9: #{_forward_packed.1} parent=1 // pred_fallthru
      _
    // Predicated region
    $region10: #{_forward_packed.1} parent=1 // pred_check
      _
    $region11: #{_forward_packed.1} parent=1 // pred_check_branch
      %32 = sbr.rel (0) target = $region13
    $region12: #{_forward_packed.1} parent=1 // pred_region
      _
    $region13: #{_forward_packed.1} parent=1 // pred_fallthru
      _
    // Predicated region
    $region14: #{_forward_packed.1} parent=1 // pred_check
      _
    $region15: #{_forward_packed.1} parent=1 // pred_check_branch
      %34 = sbr.rel (0) target = $region17
    $region16: #{_forward_packed.1} parent=1 // pred_region
      _
    $region17: #{_forward_packed.1} parent=1 // pred_fallthru
      _
    // Predicated region
    $region18: #{_forward_packed.1} parent=1 // pred_check
      _
    $region19: #{_forward_packed.1} parent=1 // pred_check_branch
      %36 = sbr.rel (0) target = $region21
    $region20: #{_forward_packed.1} parent=1 // pred_region
      _
    $region21: #{_forward_packed.1} parent=1 // pred_fallthru
      _
    // Predicated region
    $region22: #{_forward_packed.1} parent=1 // pred_check
      _
    $region23: #{_forward_packed.1} parent=1 // pred_check_branch
      %38 = sbr.rel (0) target = $region25
    $region24: #{_forward_packed.1} parent=1 // pred_region
      _
    $region25: #{_forward_packed.1} parent=1 // pred_fallthru
      _
    // Predicated region
    $region26: #{_forward_packed.1} parent=1 // pred_check
      _
    $region27: #{_forward_packed.1} parent=1 // pred_check_branch
      %40 = sbr.rel (0) target = $region29
    $region28: #{_forward_packed.1} parent=1 // pred_region
      _
    $region29: #{_forward_packed.1} parent=1 // pred_fallthru
      _
    // Predicated region
    $region30: #{_forward_packed.1} parent=1 // pred_check
      _
    $region31: #{_forward_packed.1} parent=1 // pred_check_branch
      %42 = sbr.rel (0) target = $region33
    $region32: #{_forward_packed.1} parent=1 // pred_region
      _
    $region33: #{_forward_packed.1} parent=1 // pred_fallthru
      _
    // Predicated region
    $region34: #{_forward_packed.1} parent=1 // pred_check
      _
    $region35: #{_forward_packed.1} parent=1 // pred_check_branch
      %44 = sbr.rel (0) target = $region37
    $region36: #{_forward_packed.1} parent=1 // pred_region
      _
    $region37: #{_forward_packed.1} parent=1 // pred_fallthru
      _
    // Predicated region
    $region38: #{_forward_packed.1} parent=1 // pred_check
      _
    $region39: #{_forward_packed.1} parent=1 // pred_check_branch
      %46 = sbr.rel (0) target = $region41
    $region40: #{_forward_packed.1} parent=1 // pred_region
      _
    $region41: #{_forward_packed.1} parent=1 // pred_fallthru
      _
    // Predicated region
    $region42: #{_forward_packed.1} parent=1 // pred_check
      _
    $region43: #{_forward_packed.1} parent=1 // pred_check_branch
      %48 = sbr.rel (0) target = $region45
    $region44: #{_forward_packed.1} parent=1 // pred_region
      _
    $region45: #{_forward_packed.1} parent=1 // pred_fallthru
      _
    // Predicated region
    $region46: #{_forward_packed.1} parent=1 // pred_check
      _
    $region47: #{_forward_packed.1} parent=1 // pred_check_branch
      %50 = sbr.rel (0) target = $region49
    $region48: #{_forward_packed.1} parent=1 // pred_region
      %51 = dma.done [#allocation3], 16
    $region49: #{_forward_packed.1} parent=1 // pred_fallthru
      _
    %52 = sfence
    %s54 = sld [smem:[#allocation2]]
    %s55 = sld [smem:[#allocation2 + $0x1]]
    %s56 = sld [smem:[#allocation2 + $0x2]]
    %v57 = vld [vmem:[%s1] sm:$0xff]
    %v58 = vld [vmem:[%s1 + $0x8] sm:$0xff]
    %v59 = vld [vmem:[%s1 + $0x10] sm:$0xff]
    %v60 = vld [vmem:[%s1 + $0x18] sm:$0xff]
    %v61 = vstv %s54
    %v62 = vmul.f32 %v57, %v61
    %v63 = vmul.f32 %v58, %v61
    %v64 = vmul.f32 %v59, %v61
    %v65 = vmul.f32 %v60, %v61
    %v66 = vstv %s55
    %v67 = vadd.f32 %v62, %v66
    %v68 = vadd.f32 %v63, %v66
    %v69 = vadd.f32 %v64, %v66
    %v70 = vadd.f32 %v65, %v66
    %v71 = vmax.f32 %v67, 0.0
    %v72 = vmax.f32 %v68, 0.0
    %v73 = vmax.f32 %v69, 0.0
    %v74 = vmax.f32 %v70, 0.0
    %v75 = vld [vmem:[%s2] sm:$0xf]
    %v76 = vld [vmem:[%s2 + $0x4] sm:$0xf]
    %v77 = vld [vmem:[%s2 + $0x8] sm:$0xf]
    %v78 = vld [vmem:[%s2 + $0xc] sm:$0x1]
    %v79 = vpack.c.bf16 %v72, %v71
    %v80 = vpack.c.bf16 %v74, %v73
    %v81 = vstv %s56
    %v86 = vunpack.c.l.b16 %v75
    %v87 = vunpack.c.l.b16 %v76
    %v88 = vunpack.c.l.b16 %v77
    %v89 = vunpack.c.l.b16 %v78
    %v90 = vpack.c.b16 %v87, %v86
    %v91 = vpack.c.b16 %v89, %v88
    %vm93 = vcmask 203776
    %v95 = vsel %vm93, %v79, 0
    %v98 = vsel %vm93, %v80, 0
    %vm100 = vcmask 1043456
    %vm101 = vcmask 1044480
    %v102 = vsel %vm100, 4294967295, 65535
    %v103 = vsel %vm101, %v102, 0
    %v105 = vand.u32 %v91, %v103
    %107 = vmatprep.subr.bf16.mxu0 0
    %108 = vmatpush1.bf16.msra.mxu0 0
    %109 = vmatprep.subr.bf16.mxu0 0
    %110 = vmatpush1.bf16.msra.mxu0 0
    %111 = vmatprep.subr.bf16.mxu0 0
    %112 = vmatpush1.bf16.msra.mxu0 0
    %113 = vmatprep.subr.bf16.mxu0 0
    %114 = vmatpush1.bf16.msra.mxu0 0
    %115 = vmatprep.subr.bf16.mxu0 0
    %116 = vmatpush1.bf16.msra.mxu0 0
    %117 = vmatprep.subr.bf16.mxu0 0
    %118 = vmatpush1.bf16.msra.mxu0 0
    %119 = vmatprep.subr.bf16.mxu0 0
    %120 = vmatpush1.bf16.msra.mxu0 %v105
    %121 = vmatprep.subr.bf16.mxu0 0
    %122 = vmatpush1.bf16.msra.mxu0 %v90
    %123 = vmatprep.subr.bf16.mxu0 0
    %124 = vmatpush2.bf16.msra.mxu0 0
    %125 = vmatprep.subr.bf16.mxu0 0
    %126 = vmatpush2.bf16.msra.mxu0 0
    %127 = vmatprep.subr.bf16.mxu0 0
    %128 = vmatpush2.bf16.msra.mxu0 0
    %129 = vmatprep.subr.bf16.mxu0 0
    %130 = vmatpush2.bf16.msra.mxu0 0
    %131 = vmatprep.subr.bf16.mxu0 0
    %132 = vmatpush2.bf16.msra.mxu0 0
    %133 = vmatprep.subr.bf16.mxu0 0
    %134 = vmatpush2.bf16.msra.mxu0 0
    %135 = vmatprep.subr.bf16.mxu0 0
    %136 = vmatpush2.bf16.msra.mxu0 0
    %137 = vmatprep.subr.bf16.mxu0 0
    %138 = vmatpush2.bf16.msra.mxu0 0
    %139 = vmatprep.mubr.bf16.mxu0 0
    %140 = vmatmul.mubr.bf16.gmra.mxu0 %v95
    %v141 = vpop.f32.mrf.mxu0
    %v142 = vadd.f32 %v81, %v141
    %v143 = vpop.f32.mrf.mxu0
    %v144 = vpop.f32.mrf.mxu0
    %v145 = vadd.f32 %v81, %v144
    %v146 = vpop.f32.mrf.mxu0
    %147 = vmatprep.mubr.bf16.mxu0 0
    %148 = vmatmul.mubr.bf16.gmra.mxu0 %v98
    %v149 = vpop.f32.mrf.mxu0
    %v150 = vadd.f32 %v81, %v149
    %v151 = vpop.f32.mrf.mxu0
    %v152 = vpop.f32.mrf.mxu0
    %v153 = vadd.f32 %v81, %v152
    %v154 = vpop.f32.mrf.mxu0
    %155 = vdwg.mxu0
    %v156 = vmax.f32 %v142, 0.0
    %v157 = vmax.f32 %v145, 0.0
    %v158 = vmax.f32 %v150, 0.0
    %v159 = vmax.f32 %v153, 0.0
    %v160 = vld [vmem:[%s3] sm:$0xf]
    %vm161 = vcmask 261120
    %v163 = vsel %vm161, %v160, 0
    %165 = vmatprep.subr.mxu0 0.0
    %166 = vmatpush1.msra.mxu0 0.0
    %167 = vmatprep.subr.mxu0 0.0
    %168 = vmatpush1.msra.mxu0 0.0
    %169 = vmatprep.subr.mxu0 0.0
    %170 = vmatpush1.msra.mxu0 0.0
    %171 = vmatprep.subr.mxu0 0.0
    %172 = vmatpush1.msra.mxu0 0.0
    %173 = vmatprep.subr.mxu0 0.0
    %174 = vmatpush1.msra.mxu0 0.0
    %175 = vmatprep.subr.mxu0 0.0
    %176 = vmatpush1.msra.mxu0 0.0
    %177 = vmatprep.subr.mxu0 0.0
    %178 = vmatpush1.msra.mxu0 0.0
    %179 = vmatprep.subr.mxu0 0.0
    %180 = vmatpush1.msra.mxu0 0.0
    %181 = vmatprep.subr.mxu0 0.0
    %182 = vmatpush1.msra.mxu0 0.0
    %183 = vmatprep.subr.mxu0 0.0
    %184 = vmatpush1.msra.mxu0 0.0
    %185 = vmatprep.subr.mxu0 0.0
    %186 = vmatpush1.msra.mxu0 0.0
    %187 = vmatprep.subr.mxu0 0.0
    %188 = vmatpush1.msra.mxu0 0.0
    %189 = vmatprep.subr.mxu0 0.0
    %190 = vmatpush1.msra.mxu0 %v159
    %191 = vmatprep.subr.mxu0 0.0
    %192 = vmatpush1.msra.mxu0 %v158
    %193 = vmatprep.subr.mxu0 0.0
    %194 = vmatpush1.msra.mxu0 %v157
    %195 = vmatprep.subr.mxu0 0.0
    %196 = vmatpush1.msra.mxu0 %v156
    %197 = vmatprep.subr.mxu0 0.0
    %198 = vmatpush2.msra.mxu0 0.0
    %199 = vmatprep.subr.mxu0 0.0
    %200 = vmatpush2.msra.mxu0 0.0
    %201 = vmatprep.subr.mxu0 0.0
    %202 = vmatpush2.msra.mxu0 0.0
    %203 = vmatprep.subr.mxu0 0.0
    %204 = vmatpush2.msra.mxu0 0.0
    %205 = vmatprep.subr.mxu0 0.0
    %206 = vmatpush2.msra.mxu0 0.0
    %207 = vmatprep.subr.mxu0 0.0
    %208 = vmatpush2.msra.mxu0 0.0
    %209 = vmatprep.subr.mxu0 0.0
    %210 = vmatpush2.msra.mxu0 0.0
    %211 = vmatprep.subr.mxu0 0.0
    %212 = vmatpush2.msra.mxu0 0.0
    %213 = vmatprep.subr.mxu0 0.0
    %214 = vmatpush2.msra.mxu0 0.0
    %215 = vmatprep.subr.mxu0 0.0
    %216 = vmatpush2.msra.mxu0 0.0
    %217 = vmatprep.subr.mxu0 0.0
    %218 = vmatpush2.msra.mxu0 0.0
    %219 = vmatprep.subr.mxu0 0.0
    %220 = vmatpush2.msra.mxu0 0.0
    %221 = vmatprep.subr.mxu0 0.0
    %222 = vmatpush2.msra.mxu0 0.0
    %223 = vmatprep.subr.mxu0 0.0
    %224 = vmatpush2.msra.mxu0 0.0
    %225 = vmatprep.subr.mxu0 0.0
    %226 = vmatpush2.msra.mxu0 0.0
    %227 = vmatprep.subr.mxu0 0.0
    %228 = vmatpush2.msra.mxu0 0.0
    %229 = vmatprep.mubr.bf16.mxu0 0
    %230 = vmatmul.mubr.bf16.gmra.mxu0 %v163
    %v231 = vpop.f32.mrf.mxu0
    %v232 = vadd.f32 0.0, %v231
    %v233 = vpop.f32.mrf.mxu0
    %v234 = vpop.f32.mrf.mxu0
    %v235 = vpop.f32.mrf.mxu0
    %236 = vdwg.mxu0
    %v237 = vld [vmem:[%s4] sm:$0xff]
    %v238 = vadd.f32 %v237, %v232
    %v239 = vld [vmem:[%s6] sm:$0xf]
    %v240 = vld [vmem:[%s6 + $0x4] sm:$0xf]
    %v241 = vld [vmem:[%s6 + $0x8] sm:$0xf]
    %v242 = vld [vmem:[%s6 + $0xc] sm:$0x1]
    %v243 = vpack.c.bf16 %v238, %v238
    %v248 = vunpack.c.l.b16 %v239
    %v249 = vunpack.c.l.b16 %v240
    %v250 = vunpack.c.l.b16 %v241
    %v251 = vunpack.c.l.b16 %v242
    %v252 = vpack.c.b16 %v249, %v248
    %v253 = vpack.c.b16 %v251, %v250
    %v256 = vsel %vm93, %v243, 0
    %v259 = vand.u32 %v253, %v103
    %261 = vmatprep.subr.bf16.mxu0 0
    %262 = vmatpush1.bf16.msra.mxu0 0
    %263 = vmatprep.subr.bf16.mxu0 0
    %264 = vmatpush1.bf16.msra.mxu0 0
    %265 = vmatprep.subr.bf16.mxu0 0
    %266 = vmatpush1.bf16.msra.mxu0 0
    %267 = vmatprep.subr.bf16.mxu0 0
    %268 = vmatpush1.bf16.msra.mxu0 0
    %269 = vmatprep.subr.bf16.mxu0 0
    %270 = vmatpush1.bf16.msra.mxu0 0
    %271 = vmatprep.subr.bf16.mxu0 0
    %272 = vmatpush1.bf16.msra.mxu0 0
    %273 = vmatprep.subr.bf16.mxu0 0
    %274 = vmatpush1.bf16.msra.mxu0 %v259
    %275 = vmatprep.subr.bf16.mxu0 0
    %276 = vmatpush1.bf16.msra.mxu0 %v252
    %277 = vmatprep.subr.bf16.mxu0 0
    %278 = vmatpush2.bf16.msra.mxu0 0
    %279 = vmatprep.subr.bf16.mxu0 0
    %280 = vmatpush2.bf16.msra.mxu0 0
    %281 = vmatprep.subr.bf16.mxu0 0
    %282 = vmatpush2.bf16.msra.mxu0 0
    %283 = vmatprep.subr.bf16.mxu0 0
    %284 = vmatpush2.bf16.msra.mxu0 0
    %285 = vmatprep.subr.bf16.mxu0 0
    %286 = vmatpush2.bf16.msra.mxu0 0
    %287 = vmatprep.subr.bf16.mxu0 0
    %288 = vmatpush2.bf16.msra.mxu0 0
    %289 = vmatprep.subr.bf16.mxu0 0
    %290 = vmatpush2.bf16.msra.mxu0 0
    %291 = vmatprep.subr.bf16.mxu0 0
    %292 = vmatpush2.bf16.msra.mxu0 0
    %293 = vmatprep.mubr.bf16.mxu0 0
    %294 = vmatmul.mubr.bf16.gmra.mxu0 %v256
    %v295 = vpop.f32.mrf.mxu0
    %v296 = vadd.f32 0.0, %v295
    %v297 = vpop.f32.mrf.mxu0
    %v298 = vpop.f32.mrf.mxu0
    %v299 = vpop.f32.mrf.mxu0
    %300 = vdwg.mxu0
    %v301 = vld [vmem:[%s5] sm:$0xff]
    %v302 = vld [vmem:[%s7] sm:$0xff]
    %v303 = vld [vmem:[%s7 + $0x8] sm:$0xff]
    %v304 = vld [vmem:[%s7 + $0x10] sm:$0xff]
    %v305 = vld [vmem:[%s7 + $0x18] sm:$0xff]
    %v306 = vld [vmem:[%s7 + $0x20] sm:$0xff]
    %v307 = vld [vmem:[%s7 + $0x28] sm:$0xff]
    %v308 = vld [vmem:[%s7 + $0x30] sm:$0x11]
    %v309 = vld [vmem:[%s8] sm:$0xff]
    %v310 = vld [vmem:[%s8 + $0x8] sm:$0xff]
    %v311 = vld [vmem:[%s8 + $0x10] sm:$0xff]
    %v312 = vld [vmem:[%s8 + $0x18] sm:$0x11]
    %v313 = vld [vmem:[%s9] sm:$0x3]
    %v314 = vpack.c.bf16 %v296, %v296
    %v322 = vunpack.c.l.b16 %v302
    %v323 = vunpack.c.h.b16 %v302
    %v324 = vunpack.c.l.b16 %v303
    %v325 = vunpack.c.h.b16 %v303
    %v326 = vunpack.c.l.b16 %v304
    %v327 = vunpack.c.h.b16 %v304
    %v328 = vunpack.c.l.b16 %v305
    %v329 = vunpack.c.h.b16 %v305
    %v330 = vunpack.c.l.b16 %v306
    %v331 = vunpack.c.h.b16 %v306
    %v332 = vunpack.c.l.b16 %v307
    %v333 = vunpack.c.h.b16 %v307
    %v334 = vunpack.c.l.b16 %v308
    %v335 = vunpack.c.h.b16 %v308
    %v336 = vpack.c.b16 %v324, %v322
    %v337 = vpack.c.b16 %v325, %v323
    %v338 = vpack.c.b16 %v328, %v326
    %v339 = vpack.c.b16 %v329, %v327
    %v340 = vpack.c.b16 %v332, %v330
    %v341 = vpack.c.b16 %v333, %v331
    %v342 = vpack.c.b16 %v334, %v334
    %v343 = vpack.c.b16 %v335, %v335
    %vm350 = vcmask 408576
    %v352 = vsel %vm350, %v314, 0
    %vm354 = vcmask 1040384
    %v356 = vsel %vm354, %v342, 0
    %v359 = vsel %vm354, %v343, 0
    %361 = vmatprep.subr.bf16.mxu0 0
    %362 = vmatpush1.bf16.msra.mxu0 0
    %363 = vmatprep.subr.bf16.mxu0 0
    %364 = vmatpush1.bf16.msra.mxu0 0
    %365 = vmatprep.subr.bf16.mxu0 0
    %366 = vmatpush1.bf16.msra.mxu0 0
    %367 = vmatprep.subr.bf16.mxu0 0
    %368 = vmatpush1.bf16.msra.mxu0 0
    %369 = vmatprep.subr.bf16.mxu0 %v359
    %370 = vmatpush1.bf16.msra.mxu0 %v356
    %371 = vmatprep.subr.bf16.mxu0 %v341
    %372 = vmatpush1.bf16.msra.mxu0 %v340
    %373 = vmatprep.subr.bf16.mxu0 %v339
    %374 = vmatpush1.bf16.msra.mxu0 %v338
    %375 = vmatprep.subr.bf16.mxu0 %v337
    %376 = vmatpush1.bf16.msra.mxu0 %v336
    %377 = vmatprep.subr.bf16.mxu0 0
    %378 = vmatpush2.bf16.msra.mxu0 0
    %379 = vmatprep.subr.bf16.mxu0 0
    %380 = vmatpush2.bf16.msra.mxu0 0
    %381 = vmatprep.subr.bf16.mxu0 0
    %382 = vmatpush2.bf16.msra.mxu0 0
    %383 = vmatprep.subr.bf16.mxu0 0
    %384 = vmatpush2.bf16.msra.mxu0 0
    %385 = vmatprep.subr.bf16.mxu0 0
    %386 = vmatpush2.bf16.msra.mxu0 0
    %387 = vmatprep.subr.bf16.mxu0 0
    %388 = vmatpush2.bf16.msra.mxu0 0
    %389 = vmatprep.subr.bf16.mxu0 0
    %390 = vmatpush2.bf16.msra.mxu0 0
    %391 = vmatprep.subr.bf16.mxu0 0
    %392 = vmatpush2.bf16.msra.mxu0 0
    %393 = vmatprep.mubr.bf16.mxu0 0
    %394 = vmatmul.mubr.bf16.gmra.mxu0 %v352
    %v395 = vpop.f32.mrf.mxu0
    %v396 = vadd.f32 0.0, %v395
    %v397 = vpop.f32.mrf.mxu0
    %v398 = vadd.f32 0.0, %v397
    %v399 = vpop.f32.mrf.mxu0
    %v400 = vpop.f32.mrf.mxu0
    %401 = vdwg.mxu0
    %v403 = vlaneseq
    %v404 = vshrl.u32 %v403, 7
    %v405 = vsub.s32 0, %v404
    %v406 = vrot.slane %v313, %v405
    %v407 = vlaneseq
    %v408 = vshrl.u32 %v407, 7
    %v409 = vsub.s32 1, %v408
    %v410 = vrot.slane %v313, %v409
    %v413 = vadd.f32 %v406, %v396
    %v414 = vadd.f32 %v410, %v398
    %v415 = vpack.c.bf16 %v301, %v301
    %v420 = vunpack.c.l.b16 %v309
    %v421 = vunpack.c.h.b16 %v309
    %v422 = vunpack.c.l.b16 %v310
    %v423 = vunpack.c.h.b16 %v310
    %v424 = vunpack.c.l.b16 %v311
    %v425 = vunpack.c.h.b16 %v311
    %v426 = vunpack.c.l.b16 %v312
    %v427 = vunpack.c.h.b16 %v312
    %v428 = vpack.c.b16 %v422, %v420
    %v429 = vpack.c.b16 %v423, %v421
    %v430 = vpack.c.b16 %v426, %v424
    %v431 = vpack.c.b16 %v427, %v425
    %v435 = vsel %vm93, %v415, 0
    %v438 = vand.u32 %v430, %v103
    %v441 = vand.u32 %v431, %v103
    %443 = vmatprep.subr.bf16.mxu0 0
    %444 = vmatpush1.bf16.msra.mxu0 0
    %445 = vmatprep.subr.bf16.mxu0 0
    %446 = vmatpush1.bf16.msra.mxu0 0
    %447 = vmatprep.subr.bf16.mxu0 0
    %448 = vmatpush1.bf16.msra.mxu0 0
    %449 = vmatprep.subr.bf16.mxu0 0
    %450 = vmatpush1.bf16.msra.mxu0 0
    %451 = vmatprep.subr.bf16.mxu0 0
    %452 = vmatpush1.bf16.msra.mxu0 0
    %453 = vmatprep.subr.bf16.mxu0 0
    %454 = vmatpush1.bf16.msra.mxu0 0
    %455 = vmatprep.subr.bf16.mxu0 %v441
    %456 = vmatpush1.bf16.msra.mxu0 %v438
    %457 = vmatprep.subr.bf16.mxu0 %v429
    %458 = vmatpush1.bf16.msra.mxu0 %v428
    %459 = vmatprep.subr.bf16.mxu0 0
    %460 = vmatpush2.bf16.msra.mxu0 0
    %461 = vmatprep.subr.bf16.mxu0 0
    %462 = vmatpush2.bf16.msra.mxu0 0
    %463 = vmatprep.subr.bf16.mxu0 0
    %464 = vmatpush2.bf16.msra.mxu0 0
    %465 = vmatprep.subr.bf16.mxu0 0
    %466 = vmatpush2.bf16.msra.mxu0 0
    %467 = vmatprep.subr.bf16.mxu0 0
    %468 = vmatpush2.bf16.msra.mxu0 0
    %469 = vmatprep.subr.bf16.mxu0 0
    %470 = vmatpush2.bf16.msra.mxu0 0
    %471 = vmatprep.subr.bf16.mxu0 0
    %472 = vmatpush2.bf16.msra.mxu0 0
    %473 = vmatprep.subr.bf16.mxu0 0
    %474 = vmatpush2.bf16.msra.mxu0 0
    %475 = vmatprep.mubr.bf16.mxu0 0
    %476 = vmatmul.mubr.bf16.gmra.mxu0 %v435
    %v477 = vpop.f32.mrf.mxu0
    %v478 = vadd.f32 0.0, %v477
    %v479 = vpop.f32.mrf.mxu0
    %v480 = vadd.f32 0.0, %v479
    %v481 = vpop.f32.mrf.mxu0
    %v482 = vpop.f32.mrf.mxu0
    %483 = vdwg.mxu0
    %v484 = vadd.f32 %v413, %v478
    %v485 = vadd.f32 %v414, %v480
    %v486 = vxor.u32 %v484, 2147483648
    %v487 = vxor.u32 %v485, 2147483648
    %v488 = vmul.f32 %v486, 1.442695
    %v489 = vpow.pop %v488
    %v490 = vmul.f32 %v487, 1.442695
    %v491 = vpow.pop %v490
    %v492 = vadd.f32 %v489, 1.0
    %v493 = vadd.f32 %v491, 1.0
    %v494 = vrcp.pop %v492
    %v495 = vmul.f32 1.0, %v494
    %v496 = vrcp.pop %v493
    %v497 = vmul.f32 1.0, %v496
    %v498 = vtanh.pop %v485
    %500 = vrot.lane.b32.xlu0 %v301, 18
    %v501 = vpop.permute.xlu0 %500
    %v503 = vmul.f32 %v495, %v501
    %505 = vrot.lane.b32.xlu0 %v498, 106
    %v506 = vpop.permute.xlu0 %505
    %v508 = vmul.f32 %v495, %v506
    %510 = vrot.lane.b32.xlu0 %v508, 50
    %v511 = vpop.permute.xlu0 %510
    %v513 = vadd.f32 %v503, %v511
    %514 = vrot.lane.b32.xlu0 %v301, 43
    %v515 = vpop.permute.xlu0 %514
    %v517 = vmul.f32 %v495, %v515
    %v518 = vadd.f32 %v517, %v511
    %v519 = vtanh.pop %v513
    %521 = vrot.lane.b32.xlu0 %v519, 50
    %v522 = vpop.permute.xlu0 %521
    %v524 = vmul.f32 %v495, %v522
    %v525 = vtanh.pop %v518
    %527 = vrot.lane.b32.xlu0 %v525, 50
    %v528 = vpop.permute.xlu0 %527
    %v530 = vmul.f32 %v495, %v528
    %v531 = vmul.f32 %v497, %v528
    %s532 = scalar_lea.vmem %s8, 32
    %v533 = vld [vmem:[%s532] sm:$0xff]
    %v534 = vld [vmem:[%s532 + $0x8] sm:$0xff]
    %v535 = vld [vmem:[%s532 + $0x10] sm:$0xff]
    %v536 = vld [vmem:[%s532 + $0x18] sm:$0x11]
    %s537 = scalar_lea.vmem %s8, 64
    %v538 = vld [vmem:[%s537] sm:$0xff]
    %v539 = vld [vmem:[%s537 + $0x8] sm:$0xff]
    %v540 = vld [vmem:[%s537 + $0x10] sm:$0xff]
    %v541 = vld [vmem:[%s537 + $0x18] sm:$0x11]
    %s542 = scalar_lea.vmem %s8, 96
    %v543 = vld [vmem:[%s542] sm:$0xff]
    %v544 = vld [vmem:[%s542 + $0x8] sm:$0xff]
    %v545 = vld [vmem:[%s542 + $0x10] sm:$0xff]
    %v546 = vld [vmem:[%s542 + $0x18] sm:$0x11]
    %s547 = scalar_lea.vmem %s9, 2
    %v548 = vld [vmem:[%s547] sm:$0x3]
    %v549 = vpack.c.bf16 %v524, %v524
    %551 = vrot.lane.b32.xlu0 %v549, 28
    %v552 = vpop.permute.xlu0 %551
    %v557 = vunpack.c.l.b16 %v533
    %v558 = vunpack.c.h.b16 %v533
    %v559 = vunpack.c.l.b16 %v534
    %v560 = vunpack.c.h.b16 %v534
    %v561 = vunpack.c.l.b16 %v535
    %v562 = vunpack.c.h.b16 %v535
    %v563 = vunpack.c.l.b16 %v536
    %v564 = vunpack.c.h.b16 %v536
    %v565 = vpack.c.b16 %v559, %v557
    %v566 = vpack.c.b16 %v560, %v558
    %v567 = vpack.c.b16 %v563, %v561
    %v568 = vpack.c.b16 %v564, %v562
    %v572 = vsel %vm93, %v552, 0
    %v575 = vand.u32 %v567, %v103
    %v578 = vand.u32 %v568, %v103
    %580 = vmatprep.subr.bf16.mxu0 0
    %581 = vmatpush1.bf16.msra.mxu0 0
    %582 = vmatprep.subr.bf16.mxu0 0
    %583 = vmatpush1.bf16.msra.mxu0 0
    %584 = vmatprep.subr.bf16.mxu0 0
    %585 = vmatpush1.bf16.msra.mxu0 0
    %586 = vmatprep.subr.bf16.mxu0 0
    %587 = vmatpush1.bf16.msra.mxu0 0
    %588 = vmatprep.subr.bf16.mxu0 0
    %589 = vmatpush1.bf16.msra.mxu0 0
    %590 = vmatprep.subr.bf16.mxu0 0
    %591 = vmatpush1.bf16.msra.mxu0 0
    %592 = vmatprep.subr.bf16.mxu0 %v578
    %593 = vmatpush1.bf16.msra.mxu0 %v575
    %594 = vmatprep.subr.bf16.mxu0 %v566
    %595 = vmatpush1.bf16.msra.mxu0 %v565
    %596 = vmatprep.subr.bf16.mxu0 0
    %597 = vmatpush2.bf16.msra.mxu0 0
    %598 = vmatprep.subr.bf16.mxu0 0
    %599 = vmatpush2.bf16.msra.mxu0 0
    %600 = vmatprep.subr.bf16.mxu0 0
    %601 = vmatpush2.bf16.msra.mxu0 0
    %602 = vmatprep.subr.bf16.mxu0 0
    %603 = vmatpush2.bf16.msra.mxu0 0
    %604 = vmatprep.subr.bf16.mxu0 0
    %605 = vmatpush2.bf16.msra.mxu0 0
    %606 = vmatprep.subr.bf16.mxu0 0
    %607 = vmatpush2.bf16.msra.mxu0 0
    %608 = vmatprep.subr.bf16.mxu0 0
    %609 = vmatpush2.bf16.msra.mxu0 0
    %610 = vmatprep.subr.bf16.mxu0 0
    %611 = vmatpush2.bf16.msra.mxu0 0
    %612 = vmatprep.mubr.bf16.mxu0 0
    %613 = vmatmul.mubr.bf16.gmra.mxu0 %v572
    %v614 = vpop.f32.mrf.mxu0
    %v615 = vadd.f32 0.0, %v614
    %v616 = vpop.f32.mrf.mxu0
    %v617 = vadd.f32 0.0, %v616
    %v618 = vpop.f32.mrf.mxu0
    %v619 = vpop.f32.mrf.mxu0
    %620 = vdwg.mxu0
    %v622 = vlaneseq
    %v623 = vshrl.u32 %v622, 7
    %v624 = vsub.s32 0, %v623
    %v625 = vrot.slane %v548, %v624
    %v626 = vlaneseq
    %v627 = vshrl.u32 %v626, 7
    %v628 = vsub.s32 1, %v627
    %v629 = vrot.slane %v548, %v628
    %v632 = vadd.f32 %v625, %v615
    %v633 = vadd.f32 %v629, %v617
    %v634 = vpack.c.bf16 %v530, %v530
    %v635 = vpack.c.bf16 %v531, %v531
    %638 = vrot.lane.b32.xlu0 %v634, 3
    %v639 = vpop.permute.xlu0 %638
    %640 = vrot.lane.b32.xlu0 %v635, 3
    %v641 = vpop.permute.xlu0 %640
    %vm642 = vcmask 23552
    %v643 = vsel %vm642, %v639, %v641
    %v648 = vunpack.c.l.b16 %v538
    %v649 = vunpack.c.h.b16 %v538
    %v650 = vunpack.c.l.b16 %v539
    %v651 = vunpack.c.h.b16 %v539
    %v652 = vunpack.c.l.b16 %v540
    %v653 = vunpack.c.h.b16 %v540
    %v654 = vunpack.c.l.b16 %v541
    %v655 = vunpack.c.h.b16 %v541
    %v656 = vpack.c.b16 %v650, %v648
    %v657 = vpack.c.b16 %v651, %v649
    %v658 = vpack.c.b16 %v654, %v652
    %v659 = vpack.c.b16 %v655, %v653
    %v663 = vsel %vm93, %v643, 0
    %v666 = vand.u32 %v658, %v103
    %v669 = vand.u32 %v659, %v103
    %671 = vmatprep.subr.bf16.mxu0 0
    %672 = vmatpush1.bf16.msra.mxu0 0
    %673 = vmatprep.subr.bf16.mxu0 0
    %674 = vmatpush1.bf16.msra.mxu0 0
    %675 = vmatprep.subr.bf16.mxu0 0
    %676 = vmatpush1.bf16.msra.mxu0 0
    %677 = vmatprep.subr.bf16.mxu0 0
    %678 = vmatpush1.bf16.msra.mxu0 0
    %679 = vmatprep.subr.bf16.mxu0 0
    %680 = vmatpush1.bf16.msra.mxu0 0
    %681 = vmatprep.subr.bf16.mxu0 0
    %682 = vmatpush1.bf16.msra.mxu0 0
    %683 = vmatprep.subr.bf16.mxu0 %v669
    %684 = vmatpush1.bf16.msra.mxu0 %v666
    %685 = vmatprep.subr.bf16.mxu0 %v657
    %686 = vmatpush1.bf16.msra.mxu0 %v656
    %687 = vmatprep.subr.bf16.mxu0 0
    %688 = vmatpush2.bf16.msra.mxu0 0
    %689 = vmatprep.subr.bf16.mxu0 0
    %690 = vmatpush2.bf16.msra.mxu0 0
    %691 = vmatprep.subr.bf16.mxu0 0
    %692 = vmatpush2.bf16.msra.mxu0 0
    %693 = vmatprep.subr.bf16.mxu0 0
    %694 = vmatpush2.bf16.msra.mxu0 0
    %695 = vmatprep.subr.bf16.mxu0 0
    %696 = vmatpush2.bf16.msra.mxu0 0
    %697 = vmatprep.subr.bf16.mxu0 0
    %698 = vmatpush2.bf16.msra.mxu0 0
    %699 = vmatprep.subr.bf16.mxu0 0
    %700 = vmatpush2.bf16.msra.mxu0 0
    %701 = vmatprep.subr.bf16.mxu0 0
    %702 = vmatpush2.bf16.msra.mxu0 0
    %703 = vmatprep.mubr.bf16.mxu0 0
    %704 = vmatmul.mubr.bf16.gmra.mxu0 %v663
    %v705 = vpop.f32.mrf.mxu0
    %v706 = vadd.f32 0.0, %v705
    %v707 = vpop.f32.mrf.mxu0
    %v708 = vadd.f32 0.0, %v707
    %v709 = vpop.f32.mrf.mxu0
    %v710 = vpop.f32.mrf.mxu0
    %711 = vdwg.mxu0
    %v712 = vadd.f32 %v632, %v706
    %v713 = vadd.f32 %v633, %v708
    %715 = vrot.lane.b32.xlu0 %v415, 64
    %v716 = vpop.permute.xlu0 %715
    %v721 = vunpack.c.l.b16 %v543
    %v722 = vunpack.c.h.b16 %v543
    %v723 = vunpack.c.l.b16 %v544
    %v724 = vunpack.c.h.b16 %v544
    %v725 = vunpack.c.l.b16 %v545
    %v726 = vunpack.c.h.b16 %v545
    %v727 = vunpack.c.l.b16 %v546
    %v728 = vunpack.c.h.b16 %v546
    %v729 = vpack.c.b16 %v723, %v721
    %v730 = vpack.c.b16 %v724, %v722
    %v731 = vpack.c.b16 %v727, %v725
    %v732 = vpack.c.b16 %v728, %v726
    %v736 = vsel %vm93, %v716, 0
    %v739 = vand.u32 %v731, %v103
    %v742 = vand.u32 %v732, %v103
    %744 = vmatprep.subr.bf16.mxu0 0
    %745 = vmatpush1.bf16.msra.mxu0 0
    %746 = vmatprep.subr.bf16.mxu0 0
    %747 = vmatpush1.bf16.msra.mxu0 0
    %748 = vmatprep.subr.bf16.mxu0 0
    %749 = vmatpush1.bf16.msra.mxu0 0
    %750 = vmatprep.subr.bf16.mxu0 0
    %751 = vmatpush1.bf16.msra.mxu0 0
    %752 = vmatprep.subr.bf16.mxu0 0
    %753 = vmatpush1.bf16.msra.mxu0 0
    %754 = vmatprep.subr.bf16.mxu0 0
    %755 = vmatpush1.bf16.msra.mxu0 0
    %756 = vmatprep.subr.bf16.mxu0 %v742
    %757 = vmatpush1.bf16.msra.mxu0 %v739
    %758 = vmatprep.subr.bf16.mxu0 %v730
    %759 = vmatpush1.bf16.msra.mxu0 %v729
    %760 = vmatprep.subr.bf16.mxu0 0
    %761 = vmatpush2.bf16.msra.mxu0 0
    %762 = vmatprep.subr.bf16.mxu0 0
    %763 = vmatpush2.bf16.msra.mxu0 0
    %764 = vmatprep.subr.bf16.mxu0 0
    %765 = vmatpush2.bf16.msra.mxu0 0
    %766 = vmatprep.subr.bf16.mxu0 0
    %767 = vmatpush2.bf16.msra.mxu0 0
    %768 = vmatprep.subr.bf16.mxu0 0
    %769 = vmatpush2.bf16.msra.mxu0 0
    %770 = vmatprep.subr.bf16.mxu0 0
    %771 = vmatpush2.bf16.msra.mxu0 0
    %772 = vmatprep.subr.bf16.mxu0 0
    %773 = vmatpush2.bf16.msra.mxu0 0
    %774 = vmatprep.subr.bf16.mxu0 0
    %775 = vmatpush2.bf16.msra.mxu0 0
    %776 = vmatprep.mubr.bf16.mxu0 0
    %777 = vmatmul.mubr.bf16.gmra.mxu0 %v736
    %v778 = vpop.f32.mrf.mxu0
    %v779 = vadd.f32 0.0, %v778
    %v780 = vpop.f32.mrf.mxu0
    %v781 = vadd.f32 0.0, %v780
    %v782 = vpop.f32.mrf.mxu0
    %v783 = vpop.f32.mrf.mxu0
    %784 = vdwg.mxu0
    %v785 = vadd.f32 %v712, %v779
    %v786 = vadd.f32 %v713, %v781
    %v787 = vxor.u32 %v785, 2147483648
    %v788 = vxor.u32 %v786, 2147483648
    %v789 = vmul.f32 %v787, 1.442695
    %v790 = vpow.pop %v789
    %v791 = vmul.f32 %v788, 1.442695
    %v792 = vpow.pop %v791
    %v793 = vadd.f32 %v790, 1.0
    %v794 = vadd.f32 %v792, 1.0
    %v795 = vrcp.pop %v793
    %v796 = vmul.f32 1.0, %v795
    %v797 = vrcp.pop %v794
    %v798 = vmul.f32 1.0, %v797
    %v799 = vtanh.pop %v786
    %800 = vrot.lane.b32.xlu0 %v301, 82
    %v801 = vpop.permute.xlu0 %800
    %v803 = vmul.f32 %v796, %v801
    %805 = vrot.lane.b32.xlu0 %v799, 106
    %v806 = vpop.permute.xlu0 %805
    %v808 = vmul.f32 %v796, %v806
    %810 = vrot.lane.b32.xlu0 %v808, 50
    %v811 = vpop.permute.xlu0 %810
    %v813 = vadd.f32 %v803, %v811
    %814 = vrot.lane.b32.xlu0 %v301, 107
    %v815 = vpop.permute.xlu0 %814
    %v817 = vmul.f32 %v796, %v815
    %v818 = vadd.f32 %v817, %v811
    %v819 = vtanh.pop %v813
    %821 = vrot.lane.b32.xlu0 %v819, 50
    %v822 = vpop.permute.xlu0 %821
    %v824 = vmul.f32 %v796, %v822
    %v825 = vtanh.pop %v818
    %827 = vrot.lane.b32.xlu0 %v825, 50
    %v828 = vpop.permute.xlu0 %827
    %v830 = vmul.f32 %v796, %v828
    %v831 = vmul.f32 %v798, %v828
    %v832 = vld [vmem:[%s10] sm:$0xf]
    %v833 = vld [vmem:[%s10 + $0x4] sm:$0xf]
    %v834 = vld [vmem:[%s10 + $0x8] sm:$0xf]
    %v835 = vld [vmem:[%s10 + $0xc] sm:$0x1]
    %v836 = vpack.c.bf16 %v824, %v824
    %838 = vrot.lane.b32.xlu0 %v836, 28
    %v839 = vpop.permute.xlu0 %838
    %v844 = vunpack.c.l.b16 %v832
    %v845 = vunpack.c.l.b16 %v833
    %v846 = vunpack.c.l.b16 %v834
    %v847 = vunpack.c.l.b16 %v835
    %v848 = vpack.c.b16 %v845, %v844
    %v849 = vpack.c.b16 %v847, %v846
    %v852 = vsel %vm93, %v839, 0
    %v855 = vand.u32 %v849, %v103
    %857 = vmatprep.subr.bf16.mxu0 0
    %858 = vmatpush1.bf16.msra.mxu0 0
    %859 = vmatprep.subr.bf16.mxu0 0
    %860 = vmatpush1.bf16.msra.mxu0 0
    %861 = vmatprep.subr.bf16.mxu0 0
    %862 = vmatpush1.bf16.msra.mxu0 0
    %863 = vmatprep.subr.bf16.mxu0 0
    %864 = vmatpush1.bf16.msra.mxu0 0
    %865 = vmatprep.subr.bf16.mxu0 0
    %866 = vmatpush1.bf16.msra.mxu0 0
    %867 = vmatprep.subr.bf16.mxu0 0
    %868 = vmatpush1.bf16.msra.mxu0 0
    %869 = vmatprep.subr.bf16.mxu0 0
    %870 = vmatpush1.bf16.msra.mxu0 %v855
    %871 = vmatprep.subr.bf16.mxu0 0
    %872 = vmatpush1.bf16.msra.mxu0 %v848
    %873 = vmatprep.subr.bf16.mxu0 0
    %874 = vmatpush2.bf16.msra.mxu0 0
    %875 = vmatprep.subr.bf16.mxu0 0
    %876 = vmatpush2.bf16.msra.mxu0 0
    %877 = vmatprep.subr.bf16.mxu0 0
    %878 = vmatpush2.bf16.msra.mxu0 0
    %879 = vmatprep.subr.bf16.mxu0 0
    %880 = vmatpush2.bf16.msra.mxu0 0
    %881 = vmatprep.subr.bf16.mxu0 0
    %882 = vmatpush2.bf16.msra.mxu0 0
    %883 = vmatprep.subr.bf16.mxu0 0
    %884 = vmatpush2.bf16.msra.mxu0 0
    %885 = vmatprep.subr.bf16.mxu0 0
    %886 = vmatpush2.bf16.msra.mxu0 0
    %887 = vmatprep.subr.bf16.mxu0 0
    %888 = vmatpush2.bf16.msra.mxu0 0
    %889 = vmatprep.mubr.bf16.mxu0 0
    %890 = vmatmul.mubr.bf16.gmra.mxu0 %v852
    %v891 = vpop.f32.mrf.mxu0
    %v892 = vadd.f32 0.0, %v891
    %v893 = vpop.f32.mrf.mxu0
    %v894 = vpop.f32.mrf.mxu0
    %v895 = vpop.f32.mrf.mxu0
    %896 = vdwg.mxu0
    %s897 = scalar_lea.vmem %s10, 16
    %v898 = vld [vmem:[%s897] sm:$0xf]
    %v899 = vld [vmem:[%s897 + $0x4] sm:$0xf]
    %v900 = vld [vmem:[%s897 + $0x8] sm:$0xf]
    %v901 = vld [vmem:[%s897 + $0xc] sm:$0x1]
    %v902 = vpack.c.bf16 %v830, %v830
    %v903 = vpack.c.bf16 %v831, %v831
    %906 = vrot.lane.b32.xlu0 %v902, 3
    %v907 = vpop.permute.xlu0 %906
    %908 = vrot.lane.b32.xlu0 %v903, 3
    %v909 = vpop.permute.xlu0 %908
    %v910 = vsel %vm642, %v907, %v909
    %v915 = vunpack.c.l.b16 %v898
    %v916 = vunpack.c.l.b16 %v899
    %v917 = vunpack.c.l.b16 %v900
    %v918 = vunpack.c.l.b16 %v901
    %v919 = vpack.c.b16 %v916, %v915
    %v920 = vpack.c.b16 %v918, %v917
    %v923 = vsel %vm93, %v910, 0
    %v926 = vand.u32 %v920, %v103
    %928 = vmatprep.subr.bf16.mxu0 0
    %929 = vmatpush1.bf16.msra.mxu0 0
    %930 = vmatprep.subr.bf16.mxu0 0
    %931 = vmatpush1.bf16.msra.mxu0 0
    %932 = vmatprep.subr.bf16.mxu0 0
    %933 = vmatpush1.bf16.msra.mxu0 0
    %934 = vmatprep.subr.bf16.mxu0 0
    %935 = vmatpush1.bf16.msra.mxu0 0
    %936 = vmatprep.subr.bf16.mxu0 0
    %937 = vmatpush1.bf16.msra.mxu0 0
    %938 = vmatprep.subr.bf16.mxu0 0
    %939 = vmatpush1.bf16.msra.mxu0 0
    %940 = vmatprep.subr.bf16.mxu0 0
    %941 = vmatpush1.bf16.msra.mxu0 %v926
    %942 = vmatprep.subr.bf16.mxu0 0
    %943 = vmatpush1.bf16.msra.mxu0 %v919
    %944 = vmatprep.subr.bf16.mxu0 0
    %945 = vmatpush2.bf16.msra.mxu0 0
    %946 = vmatprep.subr.bf16.mxu0 0
    %947 = vmatpush2.bf16.msra.mxu0 0
    %948 = vmatprep.subr.bf16.mxu0 0
    %949 = vmatpush2.bf16.msra.mxu0 0
    %950 = vmatprep.subr.bf16.mxu0 0
    %951 = vmatpush2.bf16.msra.mxu0 0
    %952 = vmatprep.subr.bf16.mxu0 0
    %953 = vmatpush2.bf16.msra.mxu0 0
    %954 = vmatprep.subr.bf16.mxu0 0
    %955 = vmatpush2.bf16.msra.mxu0 0
    %956 = vmatprep.subr.bf16.mxu0 0
    %957 = vmatpush2.bf16.msra.mxu0 0
    %958 = vmatprep.subr.bf16.mxu0 0
    %959 = vmatpush2.bf16.msra.mxu0 0
    %960 = vmatprep.mubr.bf16.mxu0 0
    %961 = vmatmul.mubr.bf16.gmra.mxu0 %v923
    %v962 = vpop.f32.mrf.mxu0
    %v963 = vadd.f32 0.0, %v962
    %v964 = vpop.f32.mrf.mxu0
    %v965 = vpop.f32.mrf.mxu0
    %v966 = vpop.f32.mrf.mxu0
    %967 = vdwg.mxu0
    %v968 = vxor.u32 %v963, 2147483648
    %v969 = vmul.f32 %v968, 1.442695
    %v970 = vpow.pop %v969
    %v971 = vadd.f32 %v970, 1.0
    %v972 = vrcp.pop %v971
    %v973 = vmul.f32 1.0, %v972
    %976 = vrot.lane.b32.xlu0 %v530, 103
    %v977 = vpop.permute.xlu0 %976
    %978 = vrot.lane.b32.xlu0 %v531, 103
    %v979 = vpop.permute.xlu0 %978
    %vm980 = vcmask 842752
    %v981 = vsel %vm980, %v977, %v979
    %v983 = vmul.f32 %v524, %v981
    %v984 = vmul.f32 %v983, %v983
    %986 = vrot.lane.b32.xlu0 %v984, 28
    %v987 = vpop.permute.xlu0 %986
    %v989 = vsel %vm93, %v987, 0.0
    %990 = vadd.xlane.f32.xlu0 %v989
    %v991 = vpop.xlane.xlu0 %990
    %v992 = vmax.f32 %v991, 1e-24
    %v993 = vrsqrt.pop %v992
    %v994 = vmul.f32 %v983, %v993
    %996 = vrot.lane.b32.xlu0 %v518, 103
    %v997 = vpop.permute.xlu0 %996
    %v999 = vmul.f32 %v513, %v997
    %v1000 = vmul.f32 %v999, %v999
    %1002 = vrot.lane.b32.xlu0 %v1000, 78
    %v1003 = vpop.permute.xlu0 %1002
    %v1005 = vsel %vm93, %v1003, 0.0
    %1006 = vadd.xlane.f32.xlu0 %v1005
    %v1007 = vpop.xlane.xlu0 %1006
    %v1008 = vmax.f32 %v1007, 1e-24
    %v1009 = vrsqrt.pop %v1008
    %v1010 = vmul.f32 %v999, %v1009
    %1013 = vrot.lane.b32.xlu0 %v830, 103
    %v1014 = vpop.permute.xlu0 %1013
    %1015 = vrot.lane.b32.xlu0 %v831, 103
    %v1016 = vpop.permute.xlu0 %1015
    %v1017 = vsel %vm980, %v1014, %v1016
    %v1019 = vmul.f32 %v824, %v1017
    %v1020 = vmul.f32 %v1019, %v1019
    %1022 = vrot.lane.b32.xlu0 %v1020, 28
    %v1023 = vpop.permute.xlu0 %1022
    %v1025 = vsel %vm93, %v1023, 0.0
    %1026 = vadd.xlane.f32.xlu0 %v1025
    %v1027 = vpop.xlane.xlu0 %1026
    %v1028 = vmax.f32 %v1027, 1e-24
    %v1029 = vrsqrt.pop %v1028
    %v1030 = vmul.f32 %v1019, %v1029
    %1032 = vrot.lane.b32.xlu0 %v818, 103
    %v1033 = vpop.permute.xlu0 %1032
    %v1035 = vmul.f32 %v813, %v1033
    %v1036 = vmul.f32 %v1035, %v1035
    %1038 = vrot.lane.b32.xlu0 %v1036, 78
    %v1039 = vpop.permute.xlu0 %1038
    %v1041 = vsel %vm93, %v1039, 0.0
    %1042 = vadd.xlane.f32.xlu0 %v1041
    %v1043 = vpop.xlane.xlu0 %1042
    %v1044 = vmax.f32 %v1043, 1e-24
    %v1045 = vrsqrt.pop %v1044
    %v1046 = vmul.f32 %v1035, %v1045
    %1048 = vrot.lane.b32.xlu0 %v994, 28
    %v1049 = vpop.permute.xlu0 %1048
    %1052 = vrot.lane.b32.xlu0 %v1010, 110
    %v1053 = vpop.permute.xlu0 %1052
    %1056 = vrot.lane.b32.xlu0 %v1030, 92
    %v1057 = vpop.permute.xlu0 %1056
    %1060 = vrot.lane.b32.xlu0 %v1046, 46
    %v1061 = vpop.permute.xlu0 %1060
    %v1063 = vsel %vm93, %v1049, 0.0
    %v1064 = vsel %vm161, %v1063, %v1053
    %vm1065 = vcmask 465920
    %v1066 = vsel %vm1065, %v1064, 0.0
    %vm1067 = vcmask 523264
    %v1068 = vsel %vm1067, %v1066, %v1057
    %vm1069 = vcmask 728064
    %v1070 = vsel %vm1069, %v1068, 0.0
    %vm1071 = vcmask 785408
    %v1072 = vsel %vm1071, %v1070, %v1061
    %vm1073 = vcmask 990208
    %v1074 = vsel %vm1073, %v1072, 0.0
    %1075 = vst [vmem:[%s11] sm:$0xff] %v1074
    %1077 = vrot.lane.b32.xlu0 %v892, 64
    %v1078 = vpop.permute.xlu0 %1077
    %v1080 = vsel %vm93, %v973, 0.0
    %v1081 = vsel %vm1067, %v1080, %v1078
    %v1082 = vsel %vm1069, %v1081, 0.0
    %1083 = vst [vmem:[%s12] sm:$0xff] %v1082
    // Predicated region
    $region50: #{_forward_packed.1} parent=1 // pred_check
      _
    $region51: #{_forward_packed.1} parent=1 // pred_check_branch
      %1085 = sbr.rel (0) target = $region53
    $region52: #{_forward_packed.1} parent=1 // pred_region
      _
    $region53: #{_forward_packed.1} parent=1 // pred_fallthru
      _
    // Predicated region
    $region54: #{_forward_packed.1} parent=1 // pred_check
      _
    $region55: #{_forward_packed.1} parent=1 // pred_check_branch
      %1087 = sbr.rel (0) target = $region57
    $region56: #{_forward_packed.1} parent=1 // pred_region
      _
    $region57: #{_forward_packed.1} parent=1 // pred_fallthru
      _
    // Predicated region
    $region58: #{_forward_packed.1} parent=1 // pred_check
      _
    $region59: #{_forward_packed.1} parent=1 // pred_check_branch
      %1089 = sbr.rel (0) target = $region61
    $region60: #{_forward_packed.1} parent=1 // pred_region
      _
    $region61: #{_forward_packed.1} parent=1 // pred_fallthru
      _
    // Predicated region
    $region62: #{_forward_packed.1} parent=1 // pred_check
      _
    $region63: #{_forward_packed.1} parent=1 // pred_check_branch
      %1091 = sbr.rel (0) target = $region65
    $region64: #{_forward_packed.1} parent=1 // pred_region
      _
    $region65: #{_forward_packed.1} parent=1 // pred_fallthru
      _
    %1092 = vsyncpa [#allocation3], 1

</llo_original>
